<compile_context>
chip_gen: v7x
topology: tpu7x:2x2x1
jax: 0.10.0
libtpu: 0.0.40
codegen_flags: <defaults>
</compile_context>

<pallas_src>
import functools

import jax
import jax.numpy as jnp
from jax.experimental import pallas as pl
from jax.experimental.pallas import tpu as pltpu

LANE = 128
SUBLANE = 8
TB_ALIGN = 16          # bf16 sublane packing: keep batch tiles 16-row aligned
MAX_TB = 1024


def _round_up(n, m):
    return ((n + m - 1) // m) * m


def _cdiv(a, b):
    return -(-a // b)


def policy_net_kernel(x_ref, w_ref, p_ref, o_ref, *, H, H2P, HP, AP, n1, n2):
    """Fused 3-layer MLP: (Linear+LN+ReLU) x2 + Linear.

    w_ref: packed bf16 weights, rows [0:H]=w1, [H:H+H2P]=w2, [H+H2P:H+H2P+HP]=w3.
    p_ref: packed f32 (8, W) rows [b1, g1, be1, b2, g2, be2, b3, 0].
    n1 / n2 are the TRUE LayerNorm feature counts (2H and H); padded lanes of
    the pre-LN activations are exactly zero by construction, so full-lane sums
    already equal the sums over the real features.
    """
    eps = 1e-5
    inv_n1 = 1.0 / n1
    inv_n2 = 1.0 / n2

    p = p_ref[...]                                             # (8, W) f32
    x = x_ref[...].astype(jnp.bfloat16)                        # (TB, H)

    # ---- Linear(H -> 2H) + LayerNorm(2H) + ReLU (+ Dropout = identity) ----
    h = jnp.dot(x, w_ref[0:H, 0:H2P],
                preferred_element_type=jnp.float32) + p[0:1, 0:H2P]
    s1 = jnp.sum(h, axis=-1, keepdims=True)                    # independent reductions
    s2 = jnp.sum(h * h, axis=-1, keepdims=True)
    mu = s1 * inv_n1
    var = s2 * inv_n1 - mu * mu
    a = jax.lax.rsqrt(var + eps) * p[1:2, 0:H2P]               # gamma1
    h = jnp.maximum(h * a + (p[2:3, 0:H2P] - mu * a), 0.0)     # beta1 (fused FMA LN)

    # ---- Linear(2H -> H) + LayerNorm(H) + ReLU (+ Dropout = identity) ----
    h = jnp.dot(h.astype(jnp.bfloat16), w_ref[H:H + H2P, 0:HP],
                preferred_element_type=jnp.float32) + p[3:4, 0:HP]
    s1 = jnp.sum(h, axis=-1, keepdims=True)
    s2 = jnp.sum(h * h, axis=-1, keepdims=True)
    mu = s1 * inv_n2
    var = s2 * inv_n2 - mu * mu
    a = jax.lax.rsqrt(var + eps) * p[4:5, 0:HP]                # gamma2
    h = jnp.maximum(h * a + (p[5:6, 0:HP] - mu * a), 0.0)      # beta2

    # ---- Linear(H -> A) ----
    logits = jnp.dot(h.astype(jnp.bfloat16), w_ref[H + H2P:H + H2P + HP, 0:AP],
                     preferred_element_type=jnp.float32) + p[6:7, 0:AP]
    o_ref[...] = logits.astype(o_ref.dtype)


def policy_network_forward(x, packed, dims):
    """x: (B, H) float32. packed: packed params. Returns (B, A) float32."""
    H, H2, A = dims["hidden"], dims["hidden2"], dims["action"]
    H2P, HP, AP = dims["h2p"], dims["hp"], dims["ap"]
    B = x.shape[0]

    # ---- batch-tile selection (mem/latency-bound: use big tiles, few steps) ----
    num_tiles = max(1, _cdiv(B, MAX_TB))
    if num_tiles == 1 and B > 2 * LANE:
        num_tiles = 2                       # give both v7x TensorCores work
    TB = _round_up(_cdiv(B, num_tiles), TB_ALIGN)
    Bp = _round_up(B, TB)

    # Only a (cheap) batch-row pad; no lane padding / dtype rewrite of x.
    x_in = x if Bp == B else jnp.pad(x, ((0, Bp - B), (0, 0)))

    wpack, ppack = packed["w"], packed["p"]

    in_specs = [
        pl.BlockSpec((TB, H), lambda i: (i, 0)),        # x, unpadded feature dim
        pl.BlockSpec(wpack.shape, lambda i: (0, 0)),    # packed weights (resident)
        pl.BlockSpec(ppack.shape, lambda i: (0, 0)),    # packed bias/LN (resident)
    ]
    out_specs = pl.BlockSpec((TB, AP), lambda i: (i, 0))

    # Tile-derived VMEM budget: 2x(x tile + out tile) + 2x params + f32 temps.
    param_bytes = (wpack.size * wpack.dtype.itemsize
                   + ppack.size * ppack.dtype.itemsize)
    tile_bytes = (2 * (TB * H * x.dtype.itemsize + TB * AP * 2)
                  + 2 * param_bytes
                  + 6 * TB * max(H2P, HP, AP) * 4)
    vmem_bytes = int(min(48 * 1024 * 1024, max(16 * 1024 * 1024, 2 * tile_bytes)))

    flops = 2 * Bp * (H * H2P + H2P * HP + HP * AP)
    bytes_accessed = Bp * H * x.dtype.itemsize + param_bytes + Bp * AP * 2

    kernel = functools.partial(policy_net_kernel, H=H, H2P=H2P, HP=HP, AP=AP,
                               n1=float(H2), n2=float(H))

    out = pl.pallas_call(
        kernel,
        out_shape=jax.ShapeDtypeStruct((Bp, AP), jnp.bfloat16),
        grid_spec=pltpu.PrefetchScalarGridSpec(
            num_scalar_prefetch=0,
            grid=(Bp // TB,),
            in_specs=in_specs,
            out_specs=out_specs,
        ),
        compiler_params=pltpu.CompilerParams(
            dimension_semantics=("parallel",),
            vmem_limit_bytes=vmem_bytes,
        ),
        cost_estimate=pl.CostEstimate(flops=flops, transcendentals=2 * Bp,
                                      bytes_accessed=int(bytes_accessed)),
    )(x_in, wpack, ppack)

    return out[:B, :A].astype(jnp.float32)


def init_params(hidden_size, action_size, key):
    """Unpadded synthetic parameters (shapes match PolicyNetwork.__init__).

    Weights are stored (in_features, out_features) in bf16 (MXU-native);
    biases / LayerNorm params stay f32.
    """
    ks = jax.random.split(key, 3)
    h2 = hidden_size * 2

    def lin(k, fan_in, fan_out):
        bound = 1.0 / jnp.sqrt(fan_in)
        kw, kb = jax.random.split(k)
        w = jax.random.uniform(kw, (fan_in, fan_out), jnp.float32, -bound, bound)
        b = jax.random.uniform(kb, (fan_out,), jnp.float32, -bound, bound)
        return w.astype(jnp.bfloat16), b

    w1, b1 = lin(ks[0], hidden_size, h2)
    w2, b2 = lin(ks[1], h2, hidden_size)
    w3, b3 = lin(ks[2], hidden_size, action_size)
    return {
        "w1": w1, "b1": b1,
        "g1": jnp.ones((h2,), jnp.float32), "be1": jnp.zeros((h2,), jnp.float32),
        "w2": w2, "b2": b2,
        "g2": jnp.ones((hidden_size,), jnp.float32),
        "be2": jnp.zeros((hidden_size,), jnp.float32),
        "w3": w3, "b3": b3,
    }


def pad_params(p, hidden_size, action_size):
    """Pack all params into 2 lane-padded arrays (done once, off the hot path).

    Output feature dims are zero-padded to 128 lanes; w1's input dim stays
    unpadded (x is passed unpadded).  Padded rows/cols/bias/gamma/beta are
    zero, which keeps the LayerNorm full-lane-sum trick exact.
    """
    H, A = hidden_size, action_size
    H2 = hidden_size * 2
    H2P = _round_up(H2, LANE)
    HP = _round_up(H, LANE)
    AP = _round_up(A, LANE)
    W = max(H2P, HP, AP)

    wpack = jnp.zeros((H + H2P + HP, W), jnp.bfloat16)
    wpack = wpack.at[:H, :H2].set(p["w1"])
    wpack = wpack.at[H:H + H2, :H].set(p["w2"])
    wpack = wpack.at[H + H2P:H + H2P + H, :A].set(p["w3"])

    ppack = jnp.zeros((8, W), jnp.float32)
    ppack = ppack.at[0, :H2].set(p["b1"])
    ppack = ppack.at[1, :H2].set(p["g1"])
    ppack = ppack.at[2, :H2].set(p["be1"])
    ppack = ppack.at[3, :H].set(p["b2"])
    ppack = ppack.at[4, :H].set(p["g2"])
    ppack = ppack.at[5, :H].set(p["be2"])
    ppack = ppack.at[6, :A].set(p["b3"])

    dims = {"hidden": H, "hidden2": H2, "action": A,
            "hp": HP, "h2p": H2P, "ap": AP}
    return {"w": wpack, "p": ppack}, dims


def reference_forward(x, p):
    """Pure-JAX reference (unpadded), mirroring the kernel's bf16 matmul inputs."""
    eps = 1e-5

    def ln(h, g, b):
        mu = jnp.mean(h, axis=-1, keepdims=True)
        var = jnp.mean((h - mu) ** 2, axis=-1, keepdims=True)
        return (h - mu) / jnp.sqrt(var + eps) * g + b

    xb = x.astype(jnp.bfloat16).astype(jnp.float32)
    h = xb @ p["w1"].astype(jnp.float32) + p["b1"]
    h = jnp.maximum(ln(h, p["g1"], p["be1"]), 0.0)
    h = h.astype(jnp.bfloat16).astype(jnp.float32) @ p["w2"].astype(jnp.float32) + p["b2"]
    h = jnp.maximum(ln(h, p["g2"], p["be2"]), 0.0)
    return h.astype(jnp.bfloat16).astype(jnp.float32) @ p["w3"].astype(jnp.float32) + p["b3"]


if __name__ == "__main__":
    # TODO(synk): optional sssm submodule is not modeled (sssm=None path only).
    batch, hidden_size, action_size = 8, 32, 4

    key = jax.random.PRNGKey(0)
    k_x, k_p = jax.random.split(key)
    x = jax.random.normal(k_x, (batch, hidden_size), jnp.float32)

    params = init_params(hidden_size, action_size, k_p)
    packed, dims = pad_params(params, hidden_size, action_size)

    out = policy_network_forward(x, packed, dims)
    out = jax.block_until_ready(out)

    ref = reference_forward(x, params)
    assert out.shape == (batch, action_size)
    # Kernel output is bf16-rounded; allow ~1-2 bf16 ulp of slack vs f32 ref.
    assert jnp.allclose(out, ref, atol=1e-2, rtol=1e-2), "mismatch vs JAX reference"
    print("KERNEL_OK")
</pallas_src>

<mosaic_0001>
module attributes {stable_mosaic.version = 11 : i64} {
  func.func @policy_net_kernel(%arg0: i32, %arg1: memref<16x32xf32, #tpu.memory_space<vmem>>, %arg2: memref<288x128xbf16, #tpu.memory_space<vmem>>, %arg3: memref<8x128xf32, #tpu.memory_space<vmem>>, %arg4: memref<16x128xbf16, #tpu.memory_space<vmem>>) attributes {dimension_semantics = [#tpu.dimension_semantics<parallel>], iteration_bounds = array<i64: 1>, scalar_prefetch = 0 : i64, scratch_operands = 0 : i64, tpu.core_type = #tpu.core_type<tc>, window_params = [{transform_indices = @transform_0, window_bounds = array<i64: 16, 32>}, {pipeline_mode = #tpu.pipeline_mode<synchronous>, transform_indices = @transform_1, window_bounds = array<i64: 288, 128>}, {pipeline_mode = #tpu.pipeline_mode<synchronous>, transform_indices = @transform_2, window_bounds = array<i64: 8, 128>}, {transform_indices = @transform_3, window_bounds = array<i64: 16, 128>}]} {
    %c0 = arith.constant 0 : index
    %c0_0 = arith.constant 0 : index
    %0 = vector.load %arg3[%c0, %c0_0] : memref<8x128xf32, #tpu.memory_space<vmem>>, vector<8x128xf32>
    %c0_1 = arith.constant 0 : index
    %c0_2 = arith.constant 0 : index
    %1 = vector.load %arg1[%c0_1, %c0_2] : memref<16x32xf32, #tpu.memory_space<vmem>>, vector<16x32xf32>
    %2 = arith.truncf %1 : vector<16x32xf32> to vector<16x32xbf16>
    %c0_3 = arith.constant 0 : index
    %c0_4 = arith.constant 0 : index
    %3 = vector.load %arg2[%c0_3, %c0_4] : memref<288x128xbf16, #tpu.memory_space<vmem>>, vector<32x128xbf16>
    %cst = arith.constant dense<0.000000e+00> : vector<16x128xf32>
    %4 = tpu.matmul %2, %3, %cst {dimension_numbers = #tpu.dot_dimension_numbers<[1], [0], [0], [1], [0, 0, 1, 1], [], []>} : vector<16x32xbf16>, vector<32x128xbf16>, vector<16x128xf32> -> vector<16x128xf32>
    %5 = vector.extract_strided_slice %0 {offsets = [0, 0], sizes = [1, 128], strides = [1, 1]} : vector<8x128xf32> to vector<1x128xf32>
    %6 = vector.broadcast %5 : vector<1x128xf32> to vector<16x128xf32>
    %7 = arith.addf %4, %6 : vector<16x128xf32>
    %cst_5 = arith.constant dense<0.000000e+00> : vector<16xf32>
    %8 = vector.multi_reduction <add>, %7, %cst_5 [1] : vector<16x128xf32> to vector<16xf32>
    %9 = vector.shape_cast %8 : vector<16xf32> to vector<16x1xf32>
    %10 = arith.mulf %7, %7 : vector<16x128xf32>
    %cst_6 = arith.constant dense<0.000000e+00> : vector<16xf32>
    %11 = vector.multi_reduction <add>, %10, %cst_6 [1] : vector<16x128xf32> to vector<16xf32>
    %12 = vector.shape_cast %11 : vector<16xf32> to vector<16x1xf32>
    %cst_7 = arith.constant 1.562500e-02 : f32
    %13 = vector.broadcast %cst_7 : f32 to vector<16x1xf32>
    %14 = arith.mulf %9, %13 : vector<16x1xf32>
    %cst_8 = arith.constant 1.562500e-02 : f32
    %15 = vector.broadcast %cst_8 : f32 to vector<16x1xf32>
    %16 = arith.mulf %12, %15 : vector<16x1xf32>
    %17 = arith.mulf %14, %14 : vector<16x1xf32>
    %18 = arith.subf %16, %17 : vector<16x1xf32>
    %cst_9 = arith.constant 9.99999974E-6 : f32
    %19 = vector.broadcast %cst_9 : f32 to vector<16x1xf32>
    %20 = arith.addf %18, %19 : vector<16x1xf32>
    %21 = math.rsqrt %20 : vector<16x1xf32>
    %22 = vector.extract_strided_slice %0 {offsets = [1, 0], sizes = [1, 128], strides = [1, 1]} : vector<8x128xf32> to vector<1x128xf32>
    %23 = vector.broadcast %21 : vector<16x1xf32> to vector<16x128xf32>
    %24 = vector.broadcast %22 : vector<1x128xf32> to vector<16x128xf32>
    %25 = arith.mulf %23, %24 : vector<16x128xf32>
    %26 = arith.mulf %7, %25 : vector<16x128xf32>
    %27 = vector.extract_strided_slice %0 {offsets = [2, 0], sizes = [1, 128], strides = [1, 1]} : vector<8x128xf32> to vector<1x128xf32>
    %28 = vector.broadcast %14 : vector<16x1xf32> to vector<16x128xf32>
    %29 = arith.mulf %28, %25 : vector<16x128xf32>
    %30 = vector.broadcast %27 : vector<1x128xf32> to vector<16x128xf32>
    %31 = arith.subf %30, %29 : vector<16x128xf32>
    %32 = arith.addf %26, %31 : vector<16x128xf32>
    %cst_10 = arith.constant 0.000000e+00 : f32
    %33 = vector.broadcast %cst_10 : f32 to vector<16x128xf32>
    %34 = arith.maximumf %32, %33 : vector<16x128xf32>
    %35 = arith.truncf %34 : vector<16x128xf32> to vector<16x128xbf16>
    %c32 = arith.constant 32 : index
    %c0_11 = arith.constant 0 : index
    %36 = vector.load %arg2[%c32, %c0_11] : memref<288x128xbf16, #tpu.memory_space<vmem>>, vector<128x128xbf16>
    %cst_12 = arith.constant dense<0.000000e+00> : vector<16x128xf32>
    %37 = tpu.matmul %35, %36, %cst_12 {dimension_numbers = #tpu.dot_dimension_numbers<[1], [0], [0], [1], [0, 0, 1, 1], [], []>} : vector<16x128xbf16>, vector<128x128xbf16>, vector<16x128xf32> -> vector<16x128xf32>
    %38 = vector.extract_strided_slice %0 {offsets = [3, 0], sizes = [1, 128], strides = [1, 1]} : vector<8x128xf32> to vector<1x128xf32>
    %39 = vector.broadcast %38 : vector<1x128xf32> to vector<16x128xf32>
    %40 = arith.addf %37, %39 : vector<16x128xf32>
    %cst_13 = arith.constant dense<0.000000e+00> : vector<16xf32>
    %41 = vector.multi_reduction <add>, %40, %cst_13 [1] : vector<16x128xf32> to vector<16xf32>
    %42 = vector.shape_cast %41 : vector<16xf32> to vector<16x1xf32>
    %43 = arith.mulf %40, %40 : vector<16x128xf32>
    %cst_14 = arith.constant dense<0.000000e+00> : vector<16xf32>
    %44 = vector.multi_reduction <add>, %43, %cst_14 [1] : vector<16x128xf32> to vector<16xf32>
    %45 = vector.shape_cast %44 : vector<16xf32> to vector<16x1xf32>
    %cst_15 = arith.constant 3.125000e-02 : f32
    %46 = vector.broadcast %cst_15 : f32 to vector<16x1xf32>
    %47 = arith.mulf %42, %46 : vector<16x1xf32>
    %cst_16 = arith.constant 3.125000e-02 : f32
    %48 = vector.broadcast %cst_16 : f32 to vector<16x1xf32>
    %49 = arith.mulf %45, %48 : vector<16x1xf32>
    %50 = arith.mulf %47, %47 : vector<16x1xf32>
    %51 = arith.subf %49, %50 : vector<16x1xf32>
    %cst_17 = arith.constant 9.99999974E-6 : f32
    %52 = vector.broadcast %cst_17 : f32 to vector<16x1xf32>
    %53 = arith.addf %51, %52 : vector<16x1xf32>
    %54 = math.rsqrt %53 : vector<16x1xf32>
    %55 = vector.extract_strided_slice %0 {offsets = [4, 0], sizes = [1, 128], strides = [1, 1]} : vector<8x128xf32> to vector<1x128xf32>
    %56 = vector.broadcast %54 : vector<16x1xf32> to vector<16x128xf32>
    %57 = vector.broadcast %55 : vector<1x128xf32> to vector<16x128xf32>
    %58 = arith.mulf %56, %57 : vector<16x128xf32>
    %59 = arith.mulf %40, %58 : vector<16x128xf32>
    %60 = vector.extract_strided_slice %0 {offsets = [5, 0], sizes = [1, 128], strides = [1, 1]} : vector<8x128xf32> to vector<1x128xf32>
    %61 = vector.broadcast %47 : vector<16x1xf32> to vector<16x128xf32>
    %62 = arith.mulf %61, %58 : vector<16x128xf32>
    %63 = vector.broadcast %60 : vector<1x128xf32> to vector<16x128xf32>
    %64 = arith.subf %63, %62 : vector<16x128xf32>
    %65 = arith.addf %59, %64 : vector<16x128xf32>
    %cst_18 = arith.constant 0.000000e+00 : f32
    %66 = vector.broadcast %cst_18 : f32 to vector<16x128xf32>
    %67 = arith.maximumf %65, %66 : vector<16x128xf32>
    %68 = arith.truncf %67 : vector<16x128xf32> to vector<16x128xbf16>
    %c160 = arith.constant 160 : index
    %c0_19 = arith.constant 0 : index
    %69 = vector.load %arg2[%c160, %c0_19] : memref<288x128xbf16, #tpu.memory_space<vmem>>, vector<128x128xbf16>
    %cst_20 = arith.constant dense<0.000000e+00> : vector<16x128xf32>
    %70 = tpu.matmul %68, %69, %cst_20 {dimension_numbers = #tpu.dot_dimension_numbers<[1], [0], [0], [1], [0, 0, 1, 1], [], []>} : vector<16x128xbf16>, vector<128x128xbf16>, vector<16x128xf32> -> vector<16x128xf32>
    %71 = vector.extract_strided_slice %0 {offsets = [6, 0], sizes = [1, 128], strides = [1, 1]} : vector<8x128xf32> to vector<1x128xf32>
    %72 = vector.broadcast %71 : vector<1x128xf32> to vector<16x128xf32>
    %73 = arith.addf %70, %72 : vector<16x128xf32>
    %74 = arith.truncf %73 : vector<16x128xf32> to vector<16x128xbf16>
    %c0_21 = arith.constant 0 : index
    %c0_22 = arith.constant 0 : index
    %75 = vector.load %arg4[%c0_21, %c0_22] : memref<16x128xbf16, #tpu.memory_space<vmem>>, vector<16x128xbf16>
    tpu.vector_store %arg4[%c0_21, %c0_22], %74 {strides = array<i32>} : memref<16x128xbf16, #tpu.memory_space<vmem>>, vector<16x128xbf16>,
    return
  }
  func.func @transform_0(%arg0: i32) -> (i32, i32) {
    %c0_i32 = arith.constant 0 : i32
    %c0_i32_0 = arith.constant 0 : i32
    return %arg0, %c0_i32 : i32, i32
  }
  func.func @transform_1(%arg0: i32) -> (i32, i32) {
    %c0_i32 = arith.constant 0 : i32
    %c0_i32_0 = arith.constant 0 : i32
    %c0_i32_1 = arith.constant 0 : i32
    return %c0_i32, %c0_i32_0 : i32, i32
  }
  func.func @transform_2(%arg0: i32) -> (i32, i32) {
    %c0_i32 = arith.constant 0 : i32
    %c0_i32_0 = arith.constant 0 : i32
    %c0_i32_1 = arith.constant 0 : i32
    return %c0_i32, %c0_i32_0 : i32, i32
  }
  func.func @transform_3(%arg0: i32) -> (i32, i32) {
    %c0_i32 = arith.constant 0 : i32
    %c0_i32_0 = arith.constant 0 : i32
    return %arg0, %c0_i32 : i32, i32
  }
}

</mosaic_0001>

<llo_original>
// kernel: tpu_custom_call.1
$region0: #{tpu_custom_call.1}
  #allocation0 [shape = 'u32[]', space=smem, size = 0x4, offset = 0x4, fixed_abs, tag = 'smem constant byte address 0x4 - core index']
  #allocation1 [shape = 'u32[144,128]{1,0:T(1,128)}', space=vmem, size = 0x12000, scoped, tag = 'internal scratch']
  %s0 = inlined_call_operand.hbm [shape: f32[16,32], index: 0, kind: input, shape index: {}]
  %s1 = inlined_call_operand.hbm [shape: bf16[288,128], index: 1, kind: input, shape index: {}]
  %s2 = inlined_call_operand.hbm [shape: f32[8,128], index: 2, kind: input, shape index: {}]
  %s3 = inlined_call_operand.hbm [shape: bf16[16,128], index: 3, kind: output, shape index: {}]
  %s4 = sld [smem:[#allocation0]]
  $region34: #{tpu_custom_call.1} parent=0
    _
  %s6 = ssub.s32 1, %s4
  %s7 = scalar_select 0, %s6, %s4
  $region1: #{tpu_custom_call.1} parent=0
    #allocation2 [shape = 'u8[8192]{0}', space=vmem, size = 0x2000, scoped, tag = 'input window, operand 0, single buffered']
    #allocation3 [shape = 's32[1]{0}', space=sflag, size = 0x4, scoped, tag = 'scoped memory for tpu_custom_call.1']
    #allocation4 [shape = 's32[1]{0}', space=sflag, size = 0x4, scoped, tag = 'scoped memory for tpu_custom_call.1']
    #allocation5 [shape = 'u8[73728]{0}', space=vmem, size = 0x12000, scoped, tag = 'input window, operand 1, single buffered']
    #allocation6 [shape = 's32[1]{0}', space=sflag, size = 0x4, scoped, tag = 'scoped memory for tpu_custom_call.1']
    #allocation7 [shape = 'u8[4096]{0}', space=vmem, size = 0x1000, scoped, tag = 'input window, operand 2, single buffered']
    #allocation8 [shape = 'u8[4096]{0}', space=vmem, size = 0x1000, scoped, tag = 'output window, operand 0, single buffered']
    %8 = vsyncpa [#allocation3], 0
    %9 = vsyncpa [#allocation6], 0
    %10 = vsyncpa [#allocation4], 0
    // Predicated region
    $region2: #{tpu_custom_call.1} parent=1 // pred_check
      _
    $region3: #{tpu_custom_call.1} parent=1 // pred_check_branch
      %12 = sbr.rel (0) target = $region5
    $region4: #{tpu_custom_call.1} parent=1 // pred_region
      %s14 = ssub.s32 256, 256
      %15 = vsyncadd [#allocation3], %s14
      %s16 = sshll.u32 [#allocation2], 4
      %s17 = int_to_ptr.vmem [resolvable:$true] %s16
      %22 = dma.hbm_to_vmem [thread:$0]  %s0, 256, %s17, [#allocation3], 128, 128, 8
    $region5: #{tpu_custom_call.1} parent=1 // pred_fallthru
      _
    // Predicated region
    $region6: #{tpu_custom_call.1} parent=1 // pred_check
      _
    $region7: #{tpu_custom_call.1} parent=1 // pred_check_branch
      %24 = sbr.rel (0) target = $region9
    $region8: #{tpu_custom_call.1} parent=1 // pred_region
      %s26 = ssub.s32 2304, 2304
      %27 = vsyncadd [#allocation6], %s26
      %s28 = sshll.u32 [#allocation5], 4
      %s29 = int_to_ptr.vmem [resolvable:$true] %s28
      %34 = dma.hbm_to_vmem [thread:$0]  %s1, 2304, %s29, [#allocation6], 64, 64, 4
    $region9: #{tpu_custom_call.1} parent=1 // pred_fallthru
      _
    // Predicated region
    $region10: #{tpu_custom_call.1} parent=1 // pred_check
      _
    $region11: #{tpu_custom_call.1} parent=1 // pred_check_branch
      %36 = sbr.rel (0) target = $region13
    $region12: #{tpu_custom_call.1} parent=1 // pred_region
      %s38 = ssub.s32 128, 128
      %39 = vsyncadd [#allocation6], %s38
      %s41 = sshll.u32 [#allocation7], 4
      %s42 = int_to_ptr.vmem [resolvable:$true] %s41
      %44 = dma.hbm_to_vmem [thread:$0]  %s2, 128, %s42, [#allocation6]
    $region13: #{tpu_custom_call.1} parent=1 // pred_fallthru
      _
    // Predicated region
    $region14: #{tpu_custom_call.1} parent=1 // pred_check
      _
    $region15: #{tpu_custom_call.1} parent=1 // pred_check_branch
      %46 = sbr.rel (0) target = $region17
    $region16: #{tpu_custom_call.1} parent=1 // pred_region
      %47 = dma.done [#allocation3], 256
    $region17: #{tpu_custom_call.1} parent=1 // pred_fallthru
      _
    // Predicated region
    $region18: #{tpu_custom_call.1} parent=1 // pred_check
      _
    $region19: #{tpu_custom_call.1} parent=1 // pred_check_branch
      %49 = sbr.rel (0) target = $region21
    $region20: #{tpu_custom_call.1} parent=1 // pred_region
      %50 = dma.done [#allocation6], 2304
    $region21: #{tpu_custom_call.1} parent=1 // pred_fallthru
      _
    // Predicated region
    $region22: #{tpu_custom_call.1} parent=1 // pred_check
      _
    $region23: #{tpu_custom_call.1} parent=1 // pred_check_branch
      %52 = sbr.rel (0) target = $region25
    $region24: #{tpu_custom_call.1} parent=1 // pred_region
      %53 = dma.done [#allocation6], 128
    $region25: #{tpu_custom_call.1} parent=1 // pred_fallthru
      _
    %v55 = vld [vmem:[#allocation7] sm:$0xff]
    %v56 = vld [vmem:[#allocation2] sm:$0xff]
    %v57 = vld [vmem:[#allocation2 + $0x8] sm:$0xff]
    %v58 = vpack.c.bf16 %v57, %v56
    %v59 = vld [vmem:[#allocation5] sm:$0xf]
    %v60 = vld [vmem:[#allocation5 + $0x4] sm:$0xf]
    %v61 = vld [vmem:[#allocation5 + $0x8] sm:$0xf]
    %v62 = vld [vmem:[#allocation5 + $0xc] sm:$0xf]
    %v63 = vlaneseq
    %v64 = vshrl.u32 %v63, 7
    %v65 = vsub.s32 0, %v64
    %v66 = vrot.slane %v55, %v65
    %v71 = vunpack.c.l.b16 %v59
    %v72 = vunpack.c.l.b16 %v60
    %v73 = vunpack.c.l.b16 %v61
    %v74 = vunpack.c.l.b16 %v62
    %v75 = vpack.c.b16 %v72, %v71
    %v76 = vpack.c.b16 %v74, %v73
    %vm79 = vcmask 261120
    %v81 = vsel %vm79, %v58, 0
    %83 = vmatprep.subr.bf16.mxu0 0
    %84 = vmatpush1.bf16.msra.mxu0 %v75
    %85 = vmatprep.subr.bf16.mxu0 0
    %86 = vmatpush1.bf16.msra.mxu0 %v76
    %87 = vmatprep.subr.bf16.mxu0 0
    %88 = vmatpush1.bf16.msra.mxu0 0
    %89 = vmatprep.subr.bf16.mxu0 0
    %90 = vmatpush1.bf16.msra.mxu0 0
    %91 = vmatprep.subr.bf16.mxu0 0
    %92 = vmatpush1.bf16.msra.mxu0 0
    %93 = vmatprep.subr.bf16.mxu0 0
    %94 = vmatpush1.bf16.msra.mxu0 0
    %95 = vmatprep.subr.bf16.mxu0 0
    %96 = vmatpush1.bf16.msra.mxu0 0
    %97 = vmatprep.subr.bf16.mxu0 0
    %98 = vmatpush1.bf16.msra.mxu0 0
    %99 = vmatprep.subr.bf16.mxu0 0
    %100 = vmatpush1.bf16.msra.mxu0 0
    %101 = vmatprep.subr.bf16.mxu0 0
    %102 = vmatpush1.bf16.msra.mxu0 0
    %103 = vmatprep.subr.bf16.mxu0 0
    %104 = vmatpush1.bf16.msra.mxu0 0
    %105 = vmatprep.subr.bf16.mxu0 0
    %106 = vmatpush1.bf16.msra.mxu0 0
    %107 = vmatprep.subr.bf16.mxu0 0
    %108 = vmatpush1.bf16.msra.mxu0 0
    %109 = vmatprep.subr.bf16.mxu0 0
    %110 = vmatpush1.bf16.msra.mxu0 0
    %111 = vmatprep.subr.bf16.mxu0 0
    %112 = vmatpush1.bf16.msra.mxu0 0
    %113 = vmatprep.subr.bf16.mxu0 0
    %114 = vmatpush1.bf16.msra.mxu0 0
    %115 = vmatprep.mubr.bf16.mxu0 0
    %116 = vmatmul.mubr.bf16.gmra.mrb[0].mxu0 %v81
    %v117 = vpop.f32.mrb[0].mxu0
    %v118 = vadd.f32 %v66, %v117
    %v119 = vpop.f32.mrb[0].mxu0
    %v120 = vpop.f32.mrb[0].mxu0
    %v121 = vadd.f32 %v66, %v120
    %v122 = vpop.f32.mrb[0].mxu0
    %123 = vdwg.mxu0
    %124 = vadd.xlane.f32.xlu0 %v118
    %v125 = vpop.xlane.xlu0 %124
    %126 = vadd.xlane.f32.xlu0 %v121
    %v127 = vpop.xlane.xlu0 %126
    %v128 = vmul.f32 %v118, %v118
    %v129 = vmul.f32 %v121, %v121
    %130 = vadd.xlane.f32.xlu0 %v128
    %v131 = vpop.xlane.xlu0 %130
    %132 = vadd.xlane.f32.xlu0 %v129
    %v133 = vpop.xlane.xlu0 %132
    %v134 = vmul.f32 %v125, 0.015625
    %v135 = vmul.f32 %v127, 0.015625
    %v136 = vmul.f32 %v131, 0.015625
    %v137 = vmul.f32 %v133, 0.015625
    %v138 = vmul.f32 %v134, %v134
    %v139 = vmul.f32 %v135, %v135
    %v140 = vsub.f32 %v136, %v138
    %v141 = vsub.f32 %v137, %v139
    %v142 = vadd.f32 %v140, 1e-05
    %v143 = vadd.f32 %v141, 1e-05
    %v144 = vrsqrt.pop %v142
    %v145 = vrsqrt.pop %v143
    %v146 = vlaneseq
    %v147 = vshrl.u32 %v146, 7
    %v148 = vsub.s32 1, %v147
    %v149 = vrot.slane %v55, %v148
    %v150 = vmul.f32 %v144, %v149
    %v151 = vmul.f32 %v145, %v149
    %v152 = vmul.f32 %v118, %v150
    %v153 = vmul.f32 %v121, %v151
    %v154 = vmul.f32 %v134, %v150
    %v155 = vmul.f32 %v135, %v151
    %v156 = vlaneseq
    %v157 = vshrl.u32 %v156, 7
    %v158 = vsub.s32 2, %v157
    %v159 = vrot.slane %v55, %v158
    %v160 = vsub.f32 %v159, %v154
    %v161 = vsub.f32 %v159, %v155
    %v162 = vadd.f32 %v152, %v160
    %v163 = vadd.f32 %v153, %v161
    %v164 = vmax.f32 %v162, 0.0
    %v165 = vmax.f32 %v163, 0.0
    %v166 = vpack.c.bf16 %v165, %v164
    %v167 = vld [vmem:[#allocation5 + $0x10] sm:$0xf]
    %v168 = vld [vmem:[#allocation5 + $0x14] sm:$0xf]
    %v169 = vld [vmem:[#allocation5 + $0x18] sm:$0xf]
    %v170 = vld [vmem:[#allocation5 + $0x1c] sm:$0xf]
    %v171 = vld [vmem:[#allocation5 + $0x20] sm:$0xf]
    %v172 = vld [vmem:[#allocation5 + $0x24] sm:$0xf]
    %v173 = vld [vmem:[#allocation5 + $0x28] sm:$0xf]
    %v174 = vld [vmem:[#allocation5 + $0x2c] sm:$0xf]
    %v175 = vld [vmem:[#allocation5 + $0x30] sm:$0xf]
    %v176 = vld [vmem:[#allocation5 + $0x34] sm:$0xf]
    %v177 = vld [vmem:[#allocation5 + $0x38] sm:$0xf]
    %v178 = vld [vmem:[#allocation5 + $0x3c] sm:$0xf]
    %v179 = vld [vmem:[#allocation5 + $0x40] sm:$0xf]
    %v180 = vld [vmem:[#allocation5 + $0x44] sm:$0xf]
    %v181 = vld [vmem:[#allocation5 + $0x48] sm:$0xf]
    %v182 = vld [vmem:[#allocation5 + $0x4c] sm:$0xf]
    %v183 = vlaneseq
    %v184 = vshrl.u32 %v183, 7
    %v185 = vsub.s32 3, %v184
    %v186 = vrot.slane %v55, %v185
    %v203 = vunpack.c.l.b16 %v167
    %v204 = vunpack.c.l.b16 %v168
    %v205 = vunpack.c.l.b16 %v169
    %v206 = vunpack.c.l.b16 %v170
    %v207 = vunpack.c.l.b16 %v171
    %v208 = vunpack.c.l.b16 %v172
    %v209 = vunpack.c.l.b16 %v173
    %v210 = vunpack.c.l.b16 %v174
    %v211 = vunpack.c.l.b16 %v175
    %v212 = vunpack.c.l.b16 %v176
    %v213 = vunpack.c.l.b16 %v177
    %v214 = vunpack.c.l.b16 %v178
    %v215 = vunpack.c.l.b16 %v179
    %v216 = vunpack.c.l.b16 %v180
    %v217 = vunpack.c.l.b16 %v181
    %v218 = vunpack.c.l.b16 %v182
    %v219 = vpack.c.b16 %v204, %v203
    %v220 = vpack.c.b16 %v206, %v205
    %v221 = vpack.c.b16 %v208, %v207
    %v222 = vpack.c.b16 %v210, %v209
    %v223 = vpack.c.b16 %v212, %v211
    %v224 = vpack.c.b16 %v214, %v213
    %v225 = vpack.c.b16 %v216, %v215
    %v226 = vpack.c.b16 %v218, %v217
    %235 = vmatprep.subr.bf16.mxu0 0
    %236 = vmatpush1.bf16.msra.mxu0 %v219
    %237 = vmatprep.subr.bf16.mxu0 0
    %238 = vmatpush1.bf16.msra.mxu0 %v220
    %239 = vmatprep.subr.bf16.mxu0 0
    %240 = vmatpush1.bf16.msra.mxu0 %v221
    %241 = vmatprep.subr.bf16.mxu0 0
    %242 = vmatpush1.bf16.msra.mxu0 %v222
    %243 = vmatprep.subr.bf16.mxu0 0
    %244 = vmatpush1.bf16.msra.mxu0 %v223
    %245 = vmatprep.subr.bf16.mxu0 0
    %246 = vmatpush1.bf16.msra.mxu0 %v224
    %247 = vmatprep.subr.bf16.mxu0 0
    %248 = vmatpush1.bf16.msra.mxu0 %v225
    %249 = vmatprep.subr.bf16.mxu0 0
    %250 = vmatpush1.bf16.msra.mxu0 %v226
    %251 = vmatprep.subr.bf16.mxu0 0
    %252 = vmatpush1.bf16.msra.mxu0 0
    %253 = vmatprep.subr.bf16.mxu0 0
    %254 = vmatpush1.bf16.msra.mxu0 0
    %255 = vmatprep.subr.bf16.mxu0 0
    %256 = vmatpush1.bf16.msra.mxu0 0
    %257 = vmatprep.subr.bf16.mxu0 0
    %258 = vmatpush1.bf16.msra.mxu0 0
    %259 = vmatprep.subr.bf16.mxu0 0
    %260 = vmatpush1.bf16.msra.mxu0 0
    %261 = vmatprep.subr.bf16.mxu0 0
    %262 = vmatpush1.bf16.msra.mxu0 0
    %263 = vmatprep.subr.bf16.mxu0 0
    %264 = vmatpush1.bf16.msra.mxu0 0
    %265 = vmatprep.subr.bf16.mxu0 0
    %266 = vmatpush1.bf16.msra.mxu0 0
    %267 = vmatprep.mubr.bf16.mxu0 0
    %268 = vmatmul.mubr.bf16.gmra.mrb[0].mxu0 %v166
    %v269 = vpop.f32.mrb[0].mxu0
    %v270 = vadd.f32 %v186, %v269
    %v271 = vpop.f32.mrb[0].mxu0
    %v272 = vpop.f32.mrb[0].mxu0
    %v273 = vadd.f32 %v186, %v272
    %v274 = vpop.f32.mrb[0].mxu0
    %275 = vdwg.mxu0
    %276 = vadd.xlane.f32.xlu0 %v270
    %v277 = vpop.xlane.xlu0 %276
    %278 = vadd.xlane.f32.xlu0 %v273
    %v279 = vpop.xlane.xlu0 %278
    %v280 = vmul.f32 %v270, %v270
    %v281 = vmul.f32 %v273, %v273
    %282 = vadd.xlane.f32.xlu0 %v280
    %v283 = vpop.xlane.xlu0 %282
    %284 = vadd.xlane.f32.xlu0 %v281
    %v285 = vpop.xlane.xlu0 %284
    %v286 = vmul.f32 %v277, 0.03125
    %v287 = vmul.f32 %v279, 0.03125
    %v288 = vmul.f32 %v283, 0.03125
    %v289 = vmul.f32 %v285, 0.03125
    %v290 = vmul.f32 %v286, %v286
    %v291 = vmul.f32 %v287, %v287
    %v292 = vsub.f32 %v288, %v290
    %v293 = vsub.f32 %v289, %v291
    %v294 = vadd.f32 %v292, 1e-05
    %v295 = vadd.f32 %v293, 1e-05
    %v296 = vrsqrt.pop %v294
    %v297 = vrsqrt.pop %v295
    %v298 = vlaneseq
    %v299 = vshrl.u32 %v298, 7
    %v300 = vsub.s32 4, %v299
    %v301 = vrot.slane %v55, %v300
    %v302 = vmul.f32 %v296, %v301
    %v303 = vmul.f32 %v297, %v301
    %v304 = vmul.f32 %v270, %v302
    %v305 = vmul.f32 %v273, %v303
    %v306 = vmul.f32 %v286, %v302
    %v307 = vmul.f32 %v287, %v303
    %v308 = vlaneseq
    %v309 = vshrl.u32 %v308, 7
    %v310 = vsub.s32 5, %v309
    %v311 = vrot.slane %v55, %v310
    %v312 = vsub.f32 %v311, %v306
    %v313 = vsub.f32 %v311, %v307
    %v314 = vadd.f32 %v304, %v312
    %v315 = vadd.f32 %v305, %v313
    %v316 = vmax.f32 %v314, 0.0
    %v317 = vmax.f32 %v315, 0.0
    %v318 = vpack.c.bf16 %v317, %v316
    %v319 = vld [vmem:[#allocation5 + $0x50] sm:$0xf]
    %v320 = vld [vmem:[#allocation5 + $0x54] sm:$0xf]
    %v321 = vld [vmem:[#allocation5 + $0x58] sm:$0xf]
    %v322 = vld [vmem:[#allocation5 + $0x5c] sm:$0xf]
    %v323 = vld [vmem:[#allocation5 + $0x60] sm:$0xf]
    %v324 = vld [vmem:[#allocation5 + $0x64] sm:$0xf]
    %v325 = vld [vmem:[#allocation5 + $0x68] sm:$0xf]
    %v326 = vld [vmem:[#allocation5 + $0x6c] sm:$0xf]
    %v327 = vld [vmem:[#allocation5 + $0x70] sm:$0xf]
    %v328 = vld [vmem:[#allocation5 + $0x74] sm:$0xf]
    %v329 = vld [vmem:[#allocation5 + $0x78] sm:$0xf]
    %v330 = vld [vmem:[#allocation5 + $0x7c] sm:$0xf]
    %v331 = vld [vmem:[#allocation5 + $0x80] sm:$0xf]
    %v332 = vld [vmem:[#allocation5 + $0x84] sm:$0xf]
    %v333 = vld [vmem:[#allocation5 + $0x88] sm:$0xf]
    %v334 = vld [vmem:[#allocation5 + $0x8c] sm:$0xf]
    %v335 = vlaneseq
    %v336 = vshrl.u32 %v335, 7
    %v337 = vsub.s32 6, %v336
    %v338 = vrot.slane %v55, %v337
    %v355 = vunpack.c.l.b16 %v319
    %v356 = vunpack.c.l.b16 %v320
    %v357 = vunpack.c.l.b16 %v321
    %v358 = vunpack.c.l.b16 %v322
    %v359 = vunpack.c.l.b16 %v323
    %v360 = vunpack.c.l.b16 %v324
    %v361 = vunpack.c.l.b16 %v325
    %v362 = vunpack.c.l.b16 %v326
    %v363 = vunpack.c.l.b16 %v327
    %v364 = vunpack.c.l.b16 %v328
    %v365 = vunpack.c.l.b16 %v329
    %v366 = vunpack.c.l.b16 %v330
    %v367 = vunpack.c.l.b16 %v331
    %v368 = vunpack.c.l.b16 %v332
    %v369 = vunpack.c.l.b16 %v333
    %v370 = vunpack.c.l.b16 %v334
    %v371 = vpack.c.b16 %v356, %v355
    %v372 = vpack.c.b16 %v358, %v357
    %v373 = vpack.c.b16 %v360, %v359
    %v374 = vpack.c.b16 %v362, %v361
    %v375 = vpack.c.b16 %v364, %v363
    %v376 = vpack.c.b16 %v366, %v365
    %v377 = vpack.c.b16 %v368, %v367
    %v378 = vpack.c.b16 %v370, %v369
    %387 = vmatprep.subr.bf16.mxu0 0
    %388 = vmatpush1.bf16.msra.mxu0 %v371
    %389 = vmatprep.subr.bf16.mxu0 0
    %390 = vmatpush1.bf16.msra.mxu0 %v372
    %391 = vmatprep.subr.bf16.mxu0 0
    %392 = vmatpush1.bf16.msra.mxu0 %v373
    %393 = vmatprep.subr.bf16.mxu0 0
    %394 = vmatpush1.bf16.msra.mxu0 %v374
    %395 = vmatprep.subr.bf16.mxu0 0
    %396 = vmatpush1.bf16.msra.mxu0 %v375
    %397 = vmatprep.subr.bf16.mxu0 0
    %398 = vmatpush1.bf16.msra.mxu0 %v376
    %399 = vmatprep.subr.bf16.mxu0 0
    %400 = vmatpush1.bf16.msra.mxu0 %v377
    %401 = vmatprep.subr.bf16.mxu0 0
    %402 = vmatpush1.bf16.msra.mxu0 %v378
    %403 = vmatprep.subr.bf16.mxu0 0
    %404 = vmatpush1.bf16.msra.mxu0 0
    %405 = vmatprep.subr.bf16.mxu0 0
    %406 = vmatpush1.bf16.msra.mxu0 0
    %407 = vmatprep.subr.bf16.mxu0 0
    %408 = vmatpush1.bf16.msra.mxu0 0
    %409 = vmatprep.subr.bf16.mxu0 0
    %410 = vmatpush1.bf16.msra.mxu0 0
    %411 = vmatprep.subr.bf16.mxu0 0
    %412 = vmatpush1.bf16.msra.mxu0 0
    %413 = vmatprep.subr.bf16.mxu0 0
    %414 = vmatpush1.bf16.msra.mxu0 0
    %415 = vmatprep.subr.bf16.mxu0 0
    %416 = vmatpush1.bf16.msra.mxu0 0
    %417 = vmatprep.subr.bf16.mxu0 0
    %418 = vmatpush1.bf16.msra.mxu0 0
    %419 = vmatprep.mubr.bf16.mxu0 0
    %420 = vmatmul.mubr.bf16.gmra.mrb[0].mxu0 %v318
    %v421 = vpop.f32.mrb[0].mxu0
    %v422 = vadd.f32 %v338, %v421
    %v423 = vpop.f32.mrb[0].mxu0
    %v424 = vpop.f32.mrb[0].mxu0
    %v425 = vadd.f32 %v338, %v424
    %v426 = vpop.f32.mrb[0].mxu0
    %427 = vdwg.mxu0
    %v428 = vpack.c.bf16 %v425, %v422
    %v430 = vunpack.c.l.b16 %v428
    %v431 = vunpack.c.h.b16 %v428
    %v432 = vpack.c.b16 %v430, %v430
    %v433 = vpack.c.b16 %v431, %v431
    %436 = vst [vmem:[#allocation8] sm:$0xf] %v432
    %437 = vst [vmem:[#allocation8 + $0x4] sm:$0xf] %v433
    // Predicated region
    $region26: #{tpu_custom_call.1} parent=1 // pred_check
      _
    $region27: #{tpu_custom_call.1} parent=1 // pred_check_branch
      %439 = sbr.rel (0) target = $region29
    $region28: #{tpu_custom_call.1} parent=1 // pred_region
      %s441 = ssub.s32 128, 128
      %442 = vsyncadd [#allocation4], %s441
      %s443 = sshll.u32 [#allocation8], 4
      %s444 = int_to_ptr.vmem [resolvable:$true] %s443
      %449 = dma.vmem_to_hbm [thread:$0]  %s444, 128, %s3, [#allocation4], 64, 64, 4
    $region29: #{tpu_custom_call.1} parent=1 // pred_fallthru
      _
    // Predicated region
    $region30: #{tpu_custom_call.1} parent=1 // pred_check
      _
    $region31: #{tpu_custom_call.1} parent=1 // pred_check_branch
      %451 = sbr.rel (0) target = $region33
    $region32: #{tpu_custom_call.1} parent=1 // pred_region
      %452 = dma.done [#allocation4], 128
    $region33: #{tpu_custom_call.1} parent=1 // pred_fallthru
      _
    %453 = vsyncpa [#allocation3], 1
    %454 = vsyncpa [#allocation6], 1
    %455 = vsyncpa [#allocation4], 1

</llo_original>
